<compile_context>
chip_gen: v7x
topology: tpu7x:2x2x1
jax: 0.10.0
libtpu: 0.0.40
codegen_flags: <defaults>
</compile_context>

<pallas_src>
import functools

import jax
import jax.numpy as jnp
from jax.experimental import pallas as pl
from jax.experimental.pallas import tpu as pltpu


def _ce_tile_kernel(logits_ref, target_ref, partial_ref, *, n_rows, tile_rows):
    """One row tile: (TN, C) logits + (TN, 1) targets -> (1, 8, 128) partial loss sum."""
    i = pl.program_id(0)

    x = logits_ref[...].astype(jnp.float32)                      # (TN, C)
    t = target_ref[...]                                          # (TN, 1) int32

    # Numerically-stable logsumexp pieces over the class (lane) axis.
    m = jnp.max(x, axis=-1, keepdims=True)                       # (TN, 1)
    shifted = x - m                                              # (TN, C), all <= 0
    sumexp = jnp.sum(jnp.exp(shifted), axis=-1, keepdims=True)   # (TN, 1)

    # Gather shifted[n, target[n]] via one-hot select (TPU-friendly, no gather op).
    cls_idx = jax.lax.broadcasted_iota(jnp.int32, shifted.shape, 1)
    picked = jnp.sum(jnp.where(cls_idx == t, shifted, 0.0),
                     axis=-1, keepdims=True)                     # (TN, 1)

    # row loss = logsumexp(x) - x[target] = log(sumexp) - (x[target] - max)
    row_loss = jnp.log(sumexp) - picked                          # (TN, 1)

    # Mask rows of the padded remainder tile (they read garbage logits/targets).
    row_ids = i * tile_rows + jax.lax.broadcasted_iota(
        jnp.int32, (tile_rows, 1), 0)                            # (TN, 1)
    row_loss = jnp.where(row_ids < n_rows, row_loss, 0.0)

    # One lane-dense block per tile holding the tile's partial sum (splatted).
    tile_sum = jnp.sum(row_loss, axis=0, keepdims=True)          # (1, 1)
    partial_ref[...] = jnp.broadcast_to(tile_sum[None], partial_ref.shape)


def _choose_tile_rows(n, c):
    """Rows per tile: ~2 MiB of f32 logits, multiple of 8, in [8, 8192], <= padded N."""
    budget = 2 * 1024 * 1024
    tn = budget // max(1, c * 4)
    tn = max(8, min(8192, (tn // 8) * 8))
    n_pad8 = ((n + 7) // 8) * 8
    return max(8, min(tn, n_pad8))


def cross_entropy(logits, target, *, tile_rows=None):
    """nn.CrossEntropyLoss()(logits, target) for logits (N, C) float, target (N,) int."""
    n, c = logits.shape
    tn = tile_rows if tile_rows is not None else _choose_tile_rows(n, c)
    grid = pl.cdiv(n, tn)

    target2d = target.reshape(n, 1).astype(jnp.int32)
    itemsize = jnp.dtype(logits.dtype).itemsize

    partials = pl.pallas_call(
        functools.partial(_ce_tile_kernel, n_rows=n, tile_rows=tn),
        out_shape=jax.ShapeDtypeStruct((grid, 8, 128), jnp.float32),
        grid=(grid,),
        in_specs=[
            pl.BlockSpec((tn, c), lambda i: (i, 0)),      # logits row tile (streamed)
            pl.BlockSpec((tn, 1), lambda i: (i, 0)),      # target row tile
        ],
        out_specs=pl.BlockSpec((1, 8, 128), lambda i: (i, 0, 0)),
        compiler_params=pltpu.CompilerParams(
            dimension_semantics=("parallel",),            # independent row tiles (v7x 2-TC)
            vmem_limit_bytes=32 * 1024 * 1024,            # 2x double-buffered tiles + temps
        ),
        cost_estimate=pl.CostEstimate(
            flops=6 * n * c,
            transcendentals=n * c,
            bytes_accessed=n * c * itemsize + n * 4 + grid * 8 * 128 * 4,
        ),
    )(logits, target2d)

    # Per-tile partial sums live at [:, 0, 0]; padded rows contributed 0.
    return jnp.sum(partials[:, 0, 0]) / jnp.float32(n)


def _reference(logits, target):
    x = logits.astype(jnp.float32)
    lse = jax.nn.logsumexp(x, axis=-1)
    picked = jnp.take_along_axis(x, target[:, None].astype(jnp.int32), axis=-1)[:, 0]
    return jnp.mean(lse - picked)


if __name__ == "__main__":
    key = jax.random.PRNGKey(0)
    k1, k2, k3, k4 = jax.random.split(key, 4)

    # Primary small shapes consistent with the module: batch=16, classes=32.
    N, C = 16, 32
    logits = jax.random.normal(k1, (N, C), dtype=jnp.float32)
    target = jax.random.randint(k2, (N,), 0, C, dtype=jnp.int32)
    loss = cross_entropy(logits, target)
    jax.block_until_ready(loss)
    ref = _reference(logits, target)
    assert jnp.allclose(loss, ref, atol=1e-5, rtol=1e-5), (loss, ref)

    # Ragged shapes forced onto a multi-tile grid to exercise padding/masking.
    N2, C2 = 19, 33
    logits2 = jax.random.normal(k3, (N2, C2), dtype=jnp.float32)
    target2 = jax.random.randint(k4, (N2,), 0, C2, dtype=jnp.int32)
    loss2 = cross_entropy(logits2, target2, tile_rows=8)      # grid = 3
    jax.block_until_ready(loss2)
    ref2 = _reference(logits2, target2)
    assert jnp.allclose(loss2, ref2, atol=1e-5, rtol=1e-5), (loss2, ref2)

    print("KERNEL_OK")
</pallas_src>

<mosaic_0001>
module attributes {stable_mosaic.version = 11 : i64} {
  func.func @_ce_tile_kernel(%arg0: i32, %arg1: memref<16x32xf32, #tpu.memory_space<vmem>>, %arg2: memref<16x1xi32, #tpu.memory_space<vmem>>, %arg3: memref<1x8x128xf32, #tpu.memory_space<vmem>>) attributes {dimension_semantics = [#tpu.dimension_semantics<parallel>], iteration_bounds = array<i64: 1>, scalar_prefetch = 0 : i64, scratch_operands = 0 : i64, tpu.core_type = #tpu.core_type<tc>, window_params = [{transform_indices = @transform_0, window_bounds = array<i64: 16, 32>}, {transform_indices = @transform_1, window_bounds = array<i64: 16, 1>}, {transform_indices = @transform_2, window_bounds = array<i64: 1, 8, 128>}]} {
    %c0 = arith.constant 0 : index
    %c0_0 = arith.constant 0 : index
    %0 = vector.load %arg1[%c0, %c0_0] : memref<16x32xf32, #tpu.memory_space<vmem>>, vector<16x32xf32>
    %c0_1 = arith.constant 0 : index
    %c0_2 = arith.constant 0 : index
    %1 = vector.load %arg2[%c0_1, %c0_2] : memref<16x1xi32, #tpu.memory_space<vmem>>, vector<16x1xi32>
    %cst = arith.constant dense<0xFF800000> : vector<16xf32>
    %2 = vector.multi_reduction <maximumf>, %0, %cst [1] : vector<16x32xf32> to vector<16xf32>
    %3 = vector.shape_cast %2 : vector<16xf32> to vector<16x1xf32>
    %4 = vector.broadcast %3 : vector<16x1xf32> to vector<16x32xf32>
    %5 = arith.subf %0, %4 : vector<16x32xf32>
    %6 = math.exp %5 : vector<16x32xf32>
    %cst_3 = arith.constant dense<0.000000e+00> : vector<16xf32>
    %7 = vector.multi_reduction <add>, %6, %cst_3 [1] : vector<16x32xf32> to vector<16xf32>
    %8 = vector.shape_cast %7 : vector<16xf32> to vector<16x1xf32>
    %9 = tpu.iota {dimensions = array<i32: 1>} : vector<16x32xi32>
    %10 = vector.broadcast %1 : vector<16x1xi32> to vector<16x32xi32>
    %11 = arith.cmpi eq, %9, %10 : vector<16x32xi32>
    %cst_4 = arith.constant 0.000000e+00 : f32
    %12 = vector.broadcast %cst_4 : f32 to vector<16x32xf32>
    %13 = arith.select %11, %5, %12 : vector<16x32xi1>, vector<16x32xf32>
    %cst_5 = arith.constant dense<0.000000e+00> : vector<16xf32>
    %14 = vector.multi_reduction <add>, %13, %cst_5 [1] : vector<16x32xf32> to vector<16xf32>
    %15 = vector.shape_cast %14 : vector<16xf32> to vector<16x1xf32>
    %16 = math.log %8 : vector<16x1xf32>
    %17 = arith.subf %16, %15 : vector<16x1xf32>
    %c16_i32 = arith.constant 16 : i32
    %18 = arith.muli %arg0, %c16_i32 : i32
    %19 = tpu.iota {dimensions = array<i32: 0>} : vector<16x1xi32>
    %20 = vector.broadcast %18 : i32 to vector<16x1xi32>
    %21 = arith.addi %20, %19 : vector<16x1xi32>
    %c16_i32_6 = arith.constant 16 : i32
    %22 = vector.broadcast %c16_i32_6 : i32 to vector<16x1xi32>
    %23 = arith.cmpi slt, %21, %22 : vector<16x1xi32>
    %cst_7 = arith.constant 0.000000e+00 : f32
    %24 = vector.broadcast %cst_7 : f32 to vector<16x1xf32>
    %25 = arith.select %23, %17, %24 : vector<16x1xi1>, vector<16x1xf32>
    %cst_8 = arith.constant dense<0.000000e+00> : vector<1xf32>
    %26 = vector.multi_reduction <add>, %25, %cst_8 [0] : vector<16x1xf32> to vector<1xf32>
    %27 = vector.shape_cast %26 : vector<1xf32> to vector<1x1xf32>
    %28 = vector.shape_cast %27 : vector<1x1xf32> to vector<1x1x1xf32>
    %29 = vector.shape_cast %28 : vector<1x1x1xf32> to vector<1x1x1xf32>
    %30 = vector.broadcast %29 : vector<1x1x1xf32> to vector<1x8x128xf32>
    %c0_9 = arith.constant 0 : index
    %c0_10 = arith.constant 0 : index
    %c0_11 = arith.constant 0 : index
    %31 = vector.load %arg3[%c0_9, %c0_10, %c0_11] : memref<1x8x128xf32, #tpu.memory_space<vmem>>, vector<1x8x128xf32>
    tpu.vector_store %arg3[%c0_9, %c0_10, %c0_11], %30 {strides = array<i32>} : memref<1x8x128xf32, #tpu.memory_space<vmem>>, vector<1x8x128xf32>,
    return
  }
  func.func @transform_0(%arg0: i32) -> (i32, i32) {
    %c0_i32 = arith.constant 0 : i32
    %c0_i32_0 = arith.constant 0 : i32
    return %arg0, %c0_i32 : i32, i32
  }
  func.func @transform_1(%arg0: i32) -> (i32, i32) {
    %c0_i32 = arith.constant 0 : i32
    %c0_i32_0 = arith.constant 0 : i32
    return %arg0, %c0_i32 : i32, i32
  }
  func.func @transform_2(%arg0: i32) -> (i32, i32, i32) {
    %c0_i32 = arith.constant 0 : i32
    %c0_i32_0 = arith.constant 0 : i32
    %c0_i32_1 = arith.constant 0 : i32
    return %arg0, %c0_i32, %c0_i32_0 : i32, i32, i32
  }
}

</mosaic_0001>

<llo_original>
// kernel: tpu_custom_call.1
$region0: #{tpu_custom_call.1}
  #allocation0 [shape = 'u32[]', space=smem, size = 0x4, offset = 0x4, fixed_abs, tag = 'smem constant byte address 0x4 - core index']
  #allocation1 [shape = 'u32[144,128]{1,0:T(1,128)}', space=vmem, size = 0x12000, scoped, tag = 'internal scratch']
  %s0 = inlined_call_operand.vmem [shape: f32[16,32], index: 0, kind: input, shape index: {}]
  %s1 = inlined_call_operand.vmem [shape: s32[16,1], index: 1, kind: input, shape index: {}]
  %s2 = inlined_call_operand.hbm [shape: f32[1,8,128], index: 2, kind: output, shape index: {}]
  %s3 = sld [smem:[#allocation0]]
  $region18: #{tpu_custom_call.1} parent=0
    _
  %s5 = ssub.s32 1, %s3
  %s6 = scalar_select 0, %s5, %s3
  $region1: #{tpu_custom_call.1} parent=0
    #allocation2 [shape = 'u8[4096]{0}', space=vmem, size = 0x1000, scoped, tag = 'output window, operand 0, single buffered']
    #allocation3 [shape = 's32[1]{0}', space=sflag, size = 0x4, scoped, tag = 'scoped memory for tpu_custom_call.1']
    %7 = vsyncpa [#allocation3], 0
    // Predicated region
    $region2: #{tpu_custom_call.1} parent=1 // pred_check
      _
    $region3: #{tpu_custom_call.1} parent=1 // pred_check_branch
      %9 = sbr.rel (0) target = $region5
    $region4: #{tpu_custom_call.1} parent=1 // pred_region
      _
    $region5: #{tpu_custom_call.1} parent=1 // pred_fallthru
      _
    // Predicated region
    $region6: #{tpu_custom_call.1} parent=1 // pred_check
      _
    $region7: #{tpu_custom_call.1} parent=1 // pred_check_branch
      %11 = sbr.rel (0) target = $region9
    $region8: #{tpu_custom_call.1} parent=1 // pred_region
      _
    $region9: #{tpu_custom_call.1} parent=1 // pred_fallthru
      _
    %v12 = vld [vmem:[%s0] sm:$0xff]
    %v13 = vld [vmem:[%s0 + $0x8] sm:$0xff]
    %v14 = vld [vmem:[%s1] sm:$0xff]
    %v15 = vld [vmem:[%s1 + $0x8] sm:$0xff]
    %vm16 = vcmask 261120
    %v17 = vsel %vm16, %v12, -inf
    %18 = vmax.xlane.f32.xlu0 %v17
    %v19 = vpop.xlane.xlu0 %18
    %v20 = vsel %vm16, %v13, -inf
    %21 = vmax.xlane.f32.xlu0 %v20
    %v22 = vpop.xlane.xlu0 %21
    %v23 = vsub.f32 %v12, %v19
    %v24 = vsub.f32 %v13, %v22
    %v25 = vmul.f32 %v23, 1.442695
    %v26 = vpow.pop %v25
    %v27 = vmul.f32 %v24, 1.442695
    %v28 = vpow.pop %v27
    %v29 = vsel %vm16, %v26, 0.0
    %30 = vadd.xlane.f32.xlu0 %v29
    %v31 = vpop.xlane.xlu0 %30
    %v32 = vsel %vm16, %v28, 0.0
    %33 = vadd.xlane.f32.xlu0 %v32
    %v34 = vpop.xlane.xlu0 %33
    %v35 = vlaneseq
    %v36 = vand.u32 %v35, 127
    %37 = vset.pattern.permute.xlu0 0
    %38 = vperm.xlu0 %37, %v14
    %v39 = vpop.permute.xlu0 %38
    %40 = vset.pattern.permute.xlu0 0
    %41 = vperm.xlu0 %40, %v15
    %v42 = vpop.permute.xlu0 %41
    %vm43 = vcmp.eq.s32.totalorder %v36, %v39
    %vm44 = vcmp.eq.s32.totalorder %v36, %v42
    %v45 = vsel %vm43, %v23, 0.0
    %v46 = vsel %vm44, %v24, 0.0
    %v47 = vsel %vm16, %v45, 0.0
    %48 = vadd.xlane.f32.xlu0 %v47
    %v49 = vpop.xlane.xlu0 %48
    %v50 = vsel %vm16, %v46, 0.0
    %51 = vadd.xlane.f32.xlu0 %v50
    %v52 = vpop.xlane.xlu0 %51
    %v53 = vlog2.pop %v31
    %v54 = vmul.f32 %v53, 0.6931472
    %v55 = vlog2.pop %v34
    %v56 = vmul.f32 %v55, 0.6931472
    %v57 = vsub.f32 %v54, %v49
    %v58 = vsub.f32 %v56, %v52
    %s59 = smul.u32 0, 16
    %v60 = vlaneseq
    %v61 = vshrl.u32 %v60, 7
    %v62 = vadd.s32 %v61, 8
    %v63 = vstv %s59
    %v64 = vadd.s32 %v63, %v61
    %v65 = vadd.s32 %v63, %v62
    %vm66 = vcmp.lt.s32.totalorder %v64, 16
    %vm67 = vcmp.lt.s32.totalorder %v65, 16
    %v68 = vsel %vm66, %v57, 0.0
    %v69 = vsel %vm67, %v58, 0.0
    %v70 = vadd.f32 %v68, %v69
    %v71 = vrot.slane %v70, 4
    %v72 = vadd.f32 %v70, %v71
    %v73 = vrot.slane %v72, 2
    %v74 = vadd.f32 %v72, %v73
    %v75 = vrot.slane %v74, 1
    %v76 = vadd.f32 %v74, %v75
    %77 = vst [vmem:[#allocation2] sm:$0xff] %v76
    // Predicated region
    $region10: #{tpu_custom_call.1} parent=1 // pred_check
      _
    $region11: #{tpu_custom_call.1} parent=1 // pred_check_branch
      %79 = sbr.rel (0) target = $region13
    $region12: #{tpu_custom_call.1} parent=1 // pred_region
      %s81 = ssub.s32 128, 128
      %82 = vsyncadd [#allocation3], %s81
      %s84 = sshll.u32 [#allocation2], 4
      %s85 = int_to_ptr.vmem [resolvable:$true] %s84
      %87 = dma.vmem_to_hbm [thread:$0]  %s85, 128, %s2, [#allocation3]
    $region13: #{tpu_custom_call.1} parent=1 // pred_fallthru
      _
    // Predicated region
    $region14: #{tpu_custom_call.1} parent=1 // pred_check
      _
    $region15: #{tpu_custom_call.1} parent=1 // pred_check_branch
      %89 = sbr.rel (0) target = $region17
    $region16: #{tpu_custom_call.1} parent=1 // pred_region
      %90 = dma.done [#allocation3], 128
    $region17: #{tpu_custom_call.1} parent=1 // pred_fallthru
      _
    %91 = vsyncpa [#allocation3], 1

</llo_original>
